<compile_context>
chip_gen: v7x
topology: tpu7x:2x2x1
jax: 0.10.0
libtpu: 0.0.40
codegen_flags: <defaults>
</compile_context>

<pallas_src>
import jax
import jax.numpy as jnp
from jax.experimental import pallas as pl
from jax.experimental.pallas import tpu as pltpu  # noqa: F401

REPS = 4  # torch.cat((x, x, x, x), dim=1)


def _cat_tanh4_kernel(x_ref, o_ref):
    # x_ref: (B, C*W) in VMEM; o_ref: (B, 4*C*W) in VMEM.
    cw = x_ref.shape[1]
    v = x_ref[...]
    v = jnp.tanh(jnp.tanh(jnp.tanh(jnp.tanh(v))))  # compute once
    # Replicate into the 4 concatenated slots via 4 lane-dense sliced stores.
    # (Do NOT fuse into a single full-block store: ~116 live vregs -> spills.)
    for r in range(REPS):
        o_ref[:, r * cw:(r + 1) * cw] = v


def model_forward(x):
    """Pallas implementation of Model.forward.

    x: (B, C, W) float32
    returns: (B, 4*C*W) float32
    """
    B, C, W = x.shape
    CW = C * W  # 128 * 29 = 3712 -> exact multiple of 128 (lane-dense)

    # cat along dim=1 of a contiguous tensor followed by view(B, -1) is exactly
    # [x_flat, x_flat, x_flat, x_flat] per batch row; elementwise tanh commutes
    # with both, so flattening up front is pure layout plumbing.
    x2d = x.reshape(B, CW)

    out = pl.pallas_call(
        _cat_tanh4_kernel,
        out_shape=jax.ShapeDtypeStruct((B, REPS * CW), x.dtype),
        in_specs=[pl.BlockSpec((B, CW), lambda: (0, 0))],
        out_specs=pl.BlockSpec((B, REPS * CW), lambda: (0, 0)),
    )(x2d)

    return out  # already (B, 4*C*W) == t.view(B, -1)


if __name__ == "__main__":
    key = jax.random.PRNGKey(0)
    # shape consistent with the module's example input: torch.randn(3, 128, 29)
    x = jax.random.normal(key, (3, 128, 29), dtype=jnp.float32)

    y = model_forward(x)
    y = jax.block_until_ready(y)

    # reference check (plain JAX)
    t = jnp.concatenate((x, x, x, x), axis=1)
    ref = jnp.tanh(jnp.tanh(jnp.tanh(jnp.tanh(t)))).reshape(x.shape[0], -1)

    assert y.shape == (3, 4 * 128 * 29), y.shape
    assert y.dtype == jnp.float32
    # Loosened tolerance: EUP tanh approximation vs XLA tanh lowering.
    assert jnp.allclose(y, ref, atol=1e-5, rtol=1e-5), float(
        jnp.max(jnp.abs(y - ref))
    )

    print("KERNEL_OK")
</pallas_src>

<mosaic_0001>
module attributes {stable_mosaic.version = 11 : i64} {
  func.func @_cat_tanh4_kernel(%arg0: memref<3x3712xf32, #tpu.memory_space<vmem>>, %arg1: memref<3x14848xf32, #tpu.memory_space<vmem>>) attributes {dimension_semantics = [], scalar_prefetch = 0 : i64, scratch_operands = 0 : i64, tpu.core_type = #tpu.core_type<tc>} {
    %c0 = arith.constant 0 : index
    %c0_0 = arith.constant 0 : index
    %0 = vector.load %arg0[%c0, %c0_0] : memref<3x3712xf32, #tpu.memory_space<vmem>>, vector<3x3712xf32>
    %1 = math.tanh %0 : vector<3x3712xf32>
    %2 = math.tanh %1 : vector<3x3712xf32>
    %3 = math.tanh %2 : vector<3x3712xf32>
    %4 = math.tanh %3 : vector<3x3712xf32>
    %c0_1 = arith.constant 0 : index
    %c0_2 = arith.constant 0 : index
    %5 = vector.load %arg1[%c0_1, %c0_2] : memref<3x14848xf32, #tpu.memory_space<vmem>>, vector<3x3712xf32>
    tpu.vector_store %arg1[%c0_1, %c0_2], %4 {strides = array<i32>} : memref<3x14848xf32, #tpu.memory_space<vmem>>, vector<3x3712xf32>,
    %c0_3 = arith.constant 0 : index
    %c3712 = arith.constant 3712 : index
    %6 = vector.load %arg1[%c0_3, %c3712] : memref<3x14848xf32, #tpu.memory_space<vmem>>, vector<3x3712xf32>
    tpu.vector_store %arg1[%c0_3, %c3712], %4 {strides = array<i32>} : memref<3x14848xf32, #tpu.memory_space<vmem>>, vector<3x3712xf32>,
    %c0_4 = arith.constant 0 : index
    %c7424 = arith.constant 7424 : index
    %7 = vector.load %arg1[%c0_4, %c7424] : memref<3x14848xf32, #tpu.memory_space<vmem>>, vector<3x3712xf32>
    tpu.vector_store %arg1[%c0_4, %c7424], %4 {strides = array<i32>} : memref<3x14848xf32, #tpu.memory_space<vmem>>, vector<3x3712xf32>,
    %c0_5 = arith.constant 0 : index
    %c11136 = arith.constant 11136 : index
    %8 = vector.load %arg1[%c0_5, %c11136] : memref<3x14848xf32, #tpu.memory_space<vmem>>, vector<3x3712xf32>
    tpu.vector_store %arg1[%c0_5, %c11136], %4 {strides = array<i32>} : memref<3x14848xf32, #tpu.memory_space<vmem>>, vector<3x3712xf32>,
    return
  }
}

</mosaic_0001>

<llo_original>
// kernel: tpu_custom_call.1
$region0: #{tpu_custom_call.1}
  #allocation0 [shape = 'u32[]', space=smem, size = 0x4, offset = 0x4, fixed_abs, tag = 'smem constant byte address 0x4 - core index']
  #allocation1 [shape = 'u32[144,128]{1,0:T(1,128)}', space=vmem, size = 0x12000, scoped, tag = 'internal scratch']
  %s0 = inlined_call_operand.hbm [shape: f32[3,3712], index: 0, kind: input, shape index: {}]
  %s1 = inlined_call_operand.hbm [shape: f32[3,14848], index: 1, kind: output, shape index: {}]
  %s2 = sld [smem:[#allocation0]]
  $region18: #{tpu_custom_call.1} parent=0
    _
  %s4 = ssub.s32 1, %s2
  %s5 = scalar_select 0, %s4, %s2
  $region1: #{tpu_custom_call.1} parent=0
    #allocation2 [shape = 'u8[59392]{0}', space=vmem, size = 0xe800, scoped, tag = 'input window, operand 0, single buffered']
    #allocation3 [shape = 's32[1]{0}', space=sflag, size = 0x4, scoped, tag = 'scoped memory for tpu_custom_call.1']
    #allocation4 [shape = 's32[1]{0}', space=sflag, size = 0x4, scoped, tag = 'scoped memory for tpu_custom_call.1']
    #allocation5 [shape = 'u8[237568]{0}', space=vmem, size = 0x3a000, scoped, tag = 'output window, operand 0, single buffered']
    %6 = vsyncpa [#allocation3], 0
    %7 = vsyncpa [#allocation4], 0
    // Predicated region
    $region2: #{tpu_custom_call.1} parent=1 // pred_check
      _
    $region3: #{tpu_custom_call.1} parent=1 // pred_check_branch
      %9 = sbr.rel (0) target = $region5
    $region4: #{tpu_custom_call.1} parent=1 // pred_region
      %s11 = ssub.s32 1856, 1856
      %12 = vsyncadd [#allocation3], %s11
      %s14 = sshll.u32 [#allocation2], 4
      %s15 = int_to_ptr.vmem [resolvable:$true] %s14
      %17 = dma.hbm_to_vmem [thread:$0]  %s0, 1856, %s15, [#allocation3]
    $region5: #{tpu_custom_call.1} parent=1 // pred_fallthru
      _
    // Predicated region
    $region6: #{tpu_custom_call.1} parent=1 // pred_check
      _
    $region7: #{tpu_custom_call.1} parent=1 // pred_check_branch
      %19 = sbr.rel (0) target = $region9
    $region8: #{tpu_custom_call.1} parent=1 // pred_region
      %20 = dma.done [#allocation3], 1856
    $region9: #{tpu_custom_call.1} parent=1 // pred_fallthru
      _
    %v21 = vld [vmem:[#allocation2] sm:$0x77]
    %v22 = vld [vmem:[#allocation2 + $0x8] sm:$0x77]
    %v23 = vld [vmem:[#allocation2 + $0x10] sm:$0x77]
    %v24 = vld [vmem:[#allocation2 + $0x18] sm:$0x77]
    %v25 = vld [vmem:[#allocation2 + $0x20] sm:$0x77]
    %v26 = vld [vmem:[#allocation2 + $0x28] sm:$0x77]
    %v27 = vld [vmem:[#allocation2 + $0x30] sm:$0x77]
    %v28 = vld [vmem:[#allocation2 + $0x38] sm:$0x77]
    %v29 = vld [vmem:[#allocation2 + $0x40] sm:$0x77]
    %v30 = vld [vmem:[#allocation2 + $0x48] sm:$0x77]
    %v31 = vld [vmem:[#allocation2 + $0x50] sm:$0x77]
    %v32 = vld [vmem:[#allocation2 + $0x58] sm:$0x77]
    %v33 = vld [vmem:[#allocation2 + $0x60] sm:$0x77]
    %v34 = vld [vmem:[#allocation2 + $0x68] sm:$0x77]
    %v35 = vld [vmem:[#allocation2 + $0x70] sm:$0x7]
    %v36 = vtanh.pop %v21
    %v37 = vtanh.pop %v22
    %v38 = vtanh.pop %v23
    %v39 = vtanh.pop %v24
    %v40 = vtanh.pop %v25
    %v41 = vtanh.pop %v26
    %v42 = vtanh.pop %v27
    %v43 = vtanh.pop %v28
    %v44 = vtanh.pop %v29
    %v45 = vtanh.pop %v30
    %v46 = vtanh.pop %v31
    %v47 = vtanh.pop %v32
    %v48 = vtanh.pop %v33
    %v49 = vtanh.pop %v34
    %v50 = vtanh.pop %v35
    %v51 = vtanh.pop %v36
    %v52 = vtanh.pop %v37
    %v53 = vtanh.pop %v38
    %v54 = vtanh.pop %v39
    %v55 = vtanh.pop %v40
    %v56 = vtanh.pop %v41
    %v57 = vtanh.pop %v42
    %v58 = vtanh.pop %v43
    %v59 = vtanh.pop %v44
    %v60 = vtanh.pop %v45
    %v61 = vtanh.pop %v46
    %v62 = vtanh.pop %v47
    %v63 = vtanh.pop %v48
    %v64 = vtanh.pop %v49
    %v65 = vtanh.pop %v50
    %v66 = vtanh.pop %v51
    %v67 = vtanh.pop %v52
    %v68 = vtanh.pop %v53
    %v69 = vtanh.pop %v54
    %v70 = vtanh.pop %v55
    %v71 = vtanh.pop %v56
    %v72 = vtanh.pop %v57
    %v73 = vtanh.pop %v58
    %v74 = vtanh.pop %v59
    %v75 = vtanh.pop %v60
    %v76 = vtanh.pop %v61
    %v77 = vtanh.pop %v62
    %v78 = vtanh.pop %v63
    %v79 = vtanh.pop %v64
    %v80 = vtanh.pop %v65
    %v81 = vtanh.pop %v66
    %v82 = vtanh.pop %v67
    %v83 = vtanh.pop %v68
    %v84 = vtanh.pop %v69
    %v85 = vtanh.pop %v70
    %v86 = vtanh.pop %v71
    %v87 = vtanh.pop %v72
    %v88 = vtanh.pop %v73
    %v89 = vtanh.pop %v74
    %v90 = vtanh.pop %v75
    %v91 = vtanh.pop %v76
    %v92 = vtanh.pop %v77
    %v93 = vtanh.pop %v78
    %v94 = vtanh.pop %v79
    %v95 = vtanh.pop %v80
    %96 = vst [vmem:[#allocation5] sm:$0x77] %v81
    %97 = vst [vmem:[#allocation5 + $0x8] sm:$0x77] %v82
    %98 = vst [vmem:[#allocation5 + $0x10] sm:$0x77] %v83
    %99 = vst [vmem:[#allocation5 + $0x18] sm:$0x77] %v84
    %100 = vst [vmem:[#allocation5 + $0x20] sm:$0x77] %v85
    %101 = vst [vmem:[#allocation5 + $0x28] sm:$0x77] %v86
    %102 = vst [vmem:[#allocation5 + $0x30] sm:$0x77] %v87
    %103 = vst [vmem:[#allocation5 + $0x38] sm:$0x77] %v88
    %104 = vst [vmem:[#allocation5 + $0x40] sm:$0x77] %v89
    %105 = vst [vmem:[#allocation5 + $0x48] sm:$0x77] %v90
    %106 = vst [vmem:[#allocation5 + $0x50] sm:$0x77] %v91
    %107 = vst [vmem:[#allocation5 + $0x58] sm:$0x77] %v92
    %108 = vst [vmem:[#allocation5 + $0x60] sm:$0x77] %v93
    %109 = vst [vmem:[#allocation5 + $0x68] sm:$0x77] %v94
    %110 = vst [vmem:[#allocation5 + $0x70] sm:$0x7] %v95
    %111 = vst [vmem:[#allocation5 + $0x74] sm:$0x77] %v81
    %112 = vst [vmem:[#allocation5 + $0x7c] sm:$0x77] %v82
    %113 = vst [vmem:[#allocation5 + $0x84] sm:$0x77] %v83
    %114 = vst [vmem:[#allocation5 + $0x8c] sm:$0x77] %v84
    %115 = vst [vmem:[#allocation5 + $0x94] sm:$0x77] %v85
    %116 = vst [vmem:[#allocation5 + $0x9c] sm:$0x77] %v86
    %117 = vst [vmem:[#allocation5 + $0xa4] sm:$0x77] %v87
    %118 = vst [vmem:[#allocation5 + $0xac] sm:$0x77] %v88
    %119 = vst [vmem:[#allocation5 + $0xb4] sm:$0x77] %v89
    %120 = vst [vmem:[#allocation5 + $0xbc] sm:$0x77] %v90
    %121 = vst [vmem:[#allocation5 + $0xc4] sm:$0x77] %v91
    %122 = vst [vmem:[#allocation5 + $0xcc] sm:$0x77] %v92
    %123 = vst [vmem:[#allocation5 + $0xd4] sm:$0x77] %v93
    %124 = vst [vmem:[#allocation5 + $0xdc] sm:$0x77] %v94
    %125 = vst [vmem:[#allocation5 + $0xe4] sm:$0x7] %v95
    %126 = vst [vmem:[#allocation5 + $0xe8] sm:$0x77] %v81
    %127 = vst [vmem:[#allocation5 + $0xf0] sm:$0x77] %v82
    %128 = vst [vmem:[#allocation5 + $0xf8] sm:$0x77] %v83
    %129 = vst [vmem:[#allocation5 + $0x100] sm:$0x77] %v84
    %130 = vst [vmem:[#allocation5 + $0x108] sm:$0x77] %v85
    %131 = vst [vmem:[#allocation5 + $0x110] sm:$0x77] %v86
    %132 = vst [vmem:[#allocation5 + $0x118] sm:$0x77] %v87
    %133 = vst [vmem:[#allocation5 + $0x120] sm:$0x77] %v88
    %134 = vst [vmem:[#allocation5 + $0x128] sm:$0x77] %v89
    %135 = vst [vmem:[#allocation5 + $0x130] sm:$0x77] %v90
    %136 = vst [vmem:[#allocation5 + $0x138] sm:$0x77] %v91
    %137 = vst [vmem:[#allocation5 + $0x140] sm:$0x77] %v92
    %138 = vst [vmem:[#allocation5 + $0x148] sm:$0x77] %v93
    %139 = vst [vmem:[#allocation5 + $0x150] sm:$0x77] %v94
    %140 = vst [vmem:[#allocation5 + $0x158] sm:$0x7] %v95
    %141 = vst [vmem:[#allocation5 + $0x15c] sm:$0x77] %v81
    %142 = vst [vmem:[#allocation5 + $0x164] sm:$0x77] %v82
    %143 = vst [vmem:[#allocation5 + $0x16c] sm:$0x77] %v83
    %144 = vst [vmem:[#allocation5 + $0x174] sm:$0x77] %v84
    %145 = vst [vmem:[#allocation5 + $0x17c] sm:$0x77] %v85
    %146 = vst [vmem:[#allocation5 + $0x184] sm:$0x77] %v86
    %147 = vst [vmem:[#allocation5 + $0x18c] sm:$0x77] %v87
    %148 = vst [vmem:[#allocation5 + $0x194] sm:$0x77] %v88
    %149 = vst [vmem:[#allocation5 + $0x19c] sm:$0x77] %v89
    %150 = vst [vmem:[#allocation5 + $0x1a4] sm:$0x77] %v90
    %151 = vst [vmem:[#allocation5 + $0x1ac] sm:$0x77] %v91
    %152 = vst [vmem:[#allocation5 + $0x1b4] sm:$0x77] %v92
    %153 = vst [vmem:[#allocation5 + $0x1bc] sm:$0x77] %v93
    %154 = vst [vmem:[#allocation5 + $0x1c4] sm:$0x77] %v94
    %155 = vst [vmem:[#allocation5 + $0x1cc] sm:$0x7] %v95
    // Predicated region
    $region10: #{tpu_custom_call.1} parent=1 // pred_check
      _
    $region11: #{tpu_custom_call.1} parent=1 // pred_check_branch
      %157 = sbr.rel (0) target = $region13
    $region12: #{tpu_custom_call.1} parent=1 // pred_region
      %s159 = ssub.s32 7424, 7424
      %160 = vsyncadd [#allocation4], %s159
      %s162 = sshll.u32 [#allocation5], 4
      %s163 = int_to_ptr.vmem [resolvable:$true] %s162
      %165 = dma.vmem_to_hbm [thread:$0]  %s163, 7424, %s1, [#allocation4]
    $region13: #{tpu_custom_call.1} parent=1 // pred_fallthru
      _
    // Predicated region
    $region14: #{tpu_custom_call.1} parent=1 // pred_check
      _
    $region15: #{tpu_custom_call.1} parent=1 // pred_check_branch
      %167 = sbr.rel (0) target = $region17
    $region16: #{tpu_custom_call.1} parent=1 // pred_region
      %168 = dma.done [#allocation4], 7424
    $region17: #{tpu_custom_call.1} parent=1 // pred_fallthru
      _
    %169 = vsyncpa [#allocation3], 1
    %170 = vsyncpa [#allocation4], 1

</llo_original>
